<compile_context>
chip_gen: v6e
topology: v6e:2x2x1
jax: 0.10.0
libtpu: 0.0.40
codegen_flags: <defaults>
</compile_context>

<pallas_src>
import functools
import math

import jax
import jax.numpy as jnp
from jax import lax
from jax.experimental import pallas as pl
from jax.experimental.pallas import tpu as pltpu


def _tcn_kernel(x_ref, w0_ref, w1_ref, b_ref, o_ref, *,
                rows_per_sample, shift, mxu_dtype):
    """One block of sample-aligned rows: y = relu(x @ W1 + x_prev @ W0 + b)."""
    xd = x_ref[...].astype(mxu_dtype)                        # (Rb, C)
    # Previous time step: row r reads row r - shift (shift = node groups per
    # time step).  jnp.roll with a static shift is cyclic; every wrapped row
    # is a t == 0 row and is masked to zero below (blocks are sample-aligned).
    rolled = jnp.roll(xd, shift=shift, axis=0)
    # Cheap (Rb, 1) column mask, broadcast across the 128 lanes.
    row = lax.broadcasted_iota(jnp.int32, (xd.shape[0], 1), 0)
    is_t0 = (row % rows_per_sample) < shift
    x_prev = jnp.where(is_t0, jnp.zeros((), mxu_dtype), rolled)

    y = jnp.dot(xd, w1_ref[...], preferred_element_type=jnp.float32)
    y = y + jnp.dot(x_prev, w0_ref[...], preferred_element_type=jnp.float32)
    y = y + b_ref[...]                                       # (1, C) f32 bias
    o_ref[...] = jnp.maximum(y, 0.0).astype(o_ref.dtype)


def temporal_conv_net(xh, weight, bias, *, mxu_dtype=jnp.bfloat16,
                      out_dtype=None, max_block_bytes=2 << 20,
                      target_blocks=4):
    """xh: (B,T,N,F); weight: (F,F,1,2) Conv2d weight; bias: (F,).

    Returns (B,T,N,F) in `out_dtype` (defaults to xh.dtype).  Eval-mode
    forward (dropout == identity).
    """
    # TODO(synk): nn.Dropout(0.2) is stochastic in training mode; implemented
    # here as eval-mode identity.
    B, T, N, F = xh.shape
    out_dtype = xh.dtype if out_dtype is None else out_dtype

    # ---- lane packing: P independent series share one 128-lane row ---------
    if F % 128 == 0:
        P, lane_pad = 1, 0
    elif 128 % F == 0:
        P, lane_pad = math.gcd(128 // F, N), 0
    else:
        # Awkward F: pad channels to the next 128 multiple so stores stay
        # lane-dense (the extra zero-lane MXU work is free while HBM-bound).
        P, lane_pad = 1, (-F) % 128
    Np = N // P                      # packed node groups per time step
    Cp = P * F                       # packed (unpadded) channel width
    C = Cp + lane_pad                # lane width seen by the kernel
    rows_per_sample = T * Np
    R = B * rows_per_sample

    # Free reshapes only on the fast path (no transpose, no dtype cast).
    x_rows = xh.reshape(B, T, Np, Cp).reshape(R, Cp)
    if lane_pad:
        x_rows = jnp.pad(x_rows, ((0, 0), (0, lane_pad)))

    # ---- weights: block-diagonal conv taps, stored in the MXU dtype --------
    w0_t = jnp.transpose(weight[:, :, 0, 0])     # (F_in, F_out), tap at t-1
    w1_t = jnp.transpose(weight[:, :, 0, 1])     # tap at t
    if P > 1:
        eye_p = jnp.eye(P, dtype=w0_t.dtype)
        w0_bd, w1_bd = jnp.kron(eye_p, w0_t), jnp.kron(eye_p, w1_t)
        b_bd = jnp.tile(bias, P)
    else:
        w0_bd, w1_bd, b_bd = w0_t, w1_t, bias
    if lane_pad:
        w0_bd = jnp.pad(w0_bd, ((0, lane_pad), (0, lane_pad)))
        w1_bd = jnp.pad(w1_bd, ((0, lane_pad), (0, lane_pad)))
        b_bd = jnp.pad(b_bd, ((0, lane_pad),))
    w0_bd = w0_bd.astype(mxu_dtype)
    w1_bd = w1_bd.astype(mxu_dtype)
    b_bd = b_bd.astype(jnp.float32).reshape(1, C)

    # ---- block sizing: whole samples, exact divisors of B (no pad/slice) ---
    in_item = jnp.dtype(xh.dtype).itemsize
    out_item = jnp.dtype(out_dtype).itemsize
    mxu_item = jnp.dtype(mxu_dtype).itemsize
    row_bytes = C * in_item
    divisors = [d for d in range(1, B + 1) if B % d == 0]
    # Second-to-last block dim must be a multiple of 8 (or the block covers
    # the whole array, which a single d == B block does).
    legal = [d for d in divisors if (rows_per_sample * d) % 8 == 0] or [B]
    fitting = [d for d in legal
               if rows_per_sample * d * row_bytes <= max_block_bytes]
    if fitting:
        # Prefer >= target_blocks grid steps (>= 2 pipelined steps per v7x
        # core), then the largest block that still fits under the cap.
        m = max(fitting,
                key=lambda d: (min(B // d, target_blocks),
                               rows_per_sample * d))
    else:
        # A single sample exceeds the cap: keep blocks sample-aligned (needed
        # for the roll+mask causal shift) and auto-raise the VMEM limit below.
        m = min(legal)
    block_rows = rows_per_sample * m
    num_blocks = B // m

    # ---- VMEM budget from the actual footprint ------------------------------
    blk_in = block_rows * C * in_item
    blk_out = block_rows * C * out_item
    blk_f32 = block_rows * C * 4              # in-kernel f32 temporaries
    weights_b = 2 * C * C * mxu_item + C * 4
    footprint = 2 * (blk_in + blk_out) + 2 * weights_b + 4 * blk_f32
    vmem_limit = min(max(int(footprint * 1.25), 8 << 20), 128 << 20)

    kernel = functools.partial(_tcn_kernel, rows_per_sample=rows_per_sample,
                               shift=Np, mxu_dtype=mxu_dtype)

    out_rows = pl.pallas_call(
        kernel,
        out_shape=jax.ShapeDtypeStruct((R, C), out_dtype),
        grid_spec=pl.GridSpec(
            grid=(num_blocks,),
            in_specs=[
                pl.BlockSpec((block_rows, C), lambda i: (i, 0)),
                pl.BlockSpec((C, C), lambda i: (0, 0)),
                pl.BlockSpec((C, C), lambda i: (0, 0)),
                pl.BlockSpec((1, C), lambda i: (0, 0)),
            ],
            out_specs=pl.BlockSpec((block_rows, C), lambda i: (i, 0)),
        ),
        compiler_params=pltpu.CompilerParams(
            dimension_semantics=("parallel",),
            vmem_limit_bytes=vmem_limit,
        ),
    )(x_rows, w0_bd, w1_bd, b_bd)

    if lane_pad:
        out_rows = out_rows[:, :Cp]
    # Free reshapes back to (B, T, N, F).
    return out_rows.reshape(B, T, Np, P, F).reshape(B, T, N, F)


def _reference(xh, weight, bias):
    """Pure-JAX reference of the causal conv + ReLU (eval-mode dropout)."""
    x_prev = jnp.concatenate(
        [jnp.zeros_like(xh[:, :1]), xh[:, :-1]], axis=1)       # shift in T
    w0 = weight[:, :, 0, 0]   # (F_out, F_in), tap at t-1
    w1 = weight[:, :, 0, 1]   # tap at t
    y = (jnp.einsum("btnf,of->btno", xh, w1)
         + jnp.einsum("btnf,of->btno", x_prev, w0)
         + bias[None, None, None, :])
    return jnp.maximum(y, 0.0)


if __name__ == "__main__":
    key = jax.random.PRNGKey(0)
    B, T, N, F = 2, 8, 4, 32          # batch, time, nodes, features
    K = 2                             # kernel_size

    k_x, k_w, k_b = jax.random.split(key, 3)
    xh = jax.random.normal(k_x, (B, T, N, F), dtype=jnp.float32)

    # Deterministic Conv2d-style init (uniform +/- 1/sqrt(fan_in)), fan_in = F*1*K.
    bound = 1.0 / math.sqrt(F * 1 * K)
    weight = jax.random.uniform(k_w, (F, F, 1, K), minval=-bound, maxval=bound,
                                dtype=jnp.float32)
    bias = jax.random.uniform(k_b, (F,), minval=-bound, maxval=bound,
                              dtype=jnp.float32)

    ref = _reference(xh, weight, bias)

    # Exact-math check (f32 MXU operands) validates roll/mask/packing logic.
    out_exact = jax.block_until_ready(
        temporal_conv_net(xh, weight, bias, mxu_dtype=jnp.float32))
    assert out_exact.shape == (B, T, N, F)
    assert bool(jnp.allclose(out_exact, ref, atol=1e-5, rtol=1e-5)), \
        "f32 mismatch vs reference"

    # Default fast path: bf16 MXU operands, f32 accumulation and f32 I/O.
    out = jax.block_until_ready(temporal_conv_net(xh, weight, bias))
    assert out.shape == (B, T, N, F)
    assert out.dtype == xh.dtype
    max_err = float(jnp.max(jnp.abs(out - ref)))
    assert max_err < 5e-2, f"bf16-MXU mismatch vs reference: max abs err {max_err}"

    print("KERNEL_OK")
</pallas_src>

<mosaic_0001>
module attributes {stable_mosaic.version = 11 : i64} {
  func.func @_tcn_kernel(%arg0: i32, %arg1: memref<8x128xf32, #tpu.memory_space<vmem>>, %arg2: memref<128x128xf32, #tpu.memory_space<vmem>>, %arg3: memref<128x128xf32, #tpu.memory_space<vmem>>, %arg4: memref<1x128xf32, #tpu.memory_space<vmem>>, %arg5: memref<8x128xf32, #tpu.memory_space<vmem>>) attributes {dimension_semantics = [#tpu.dimension_semantics<parallel>], iteration_bounds = array<i64: 2>, scalar_prefetch = 0 : i64, scratch_operands = 0 : i64, tpu.core_type = #tpu.core_type<tc>, window_params = [{transform_indices = @transform_0, window_bounds = array<i64: 8, 128>}, {pipeline_mode = #tpu.pipeline_mode<synchronous>, transform_indices = @transform_1, window_bounds = array<i64: 128, 128>}, {pipeline_mode = #tpu.pipeline_mode<synchronous>, transform_indices = @transform_2, window_bounds = array<i64: 128, 128>}, {pipeline_mode = #tpu.pipeline_mode<synchronous>, transform_indices = @transform_3, window_bounds = array<i64: 1, 128>}, {transform_indices = @transform_4, window_bounds = array<i64: 8, 128>}]} {
    %c0 = arith.constant 0 : index
    %c0_0 = arith.constant 0 : index
    %0 = vector.load %arg1[%c0, %c0_0] : memref<8x128xf32, #tpu.memory_space<vmem>>, vector<8x128xf32>
    %1 = vector.extract_strided_slice %0 {offsets = [7, 0], sizes = [1, 128], strides = [1, 1]} : vector<8x128xf32> to vector<1x128xf32>
    %2 = vector.extract_strided_slice %0 {offsets = [0, 0], sizes = [7, 128], strides = [1, 1]} : vector<8x128xf32> to vector<7x128xf32>
    %3 = tpu.concatenate %1, %2 in 0 : vector<1x128xf32>, vector<7x128xf32> -> vector<8x128xf32>
    %4 = tpu.iota {dimensions = array<i32: 0>} : vector<8x1xi32>
    %c8_i32 = arith.constant 8 : i32
    %c0_i32 = arith.constant 0 : i32
    %5 = arith.cmpi eq, %c8_i32, %c0_i32 : i32
    %c1_i32 = arith.constant 1 : i32
    %6 = arith.select %5, %c1_i32, %c8_i32 : i32
    %7 = vector.broadcast %6 : i32 to vector<8x1xi32>
    %8 = arith.remsi %4, %7 : vector<8x1xi32>
    %c0_i32_1 = arith.constant 0 : i32
    %9 = vector.broadcast %c0_i32_1 : i32 to vector<8x1xi32>
    %10 = arith.cmpi ne, %8, %9 : vector<8x1xi32>
    %c0_i32_2 = arith.constant 0 : i32
    %11 = vector.broadcast %c0_i32_2 : i32 to vector<8x1xi32>
    %12 = arith.cmpi slt, %8, %11 : vector<8x1xi32>
    %c0_i32_3 = arith.constant 0 : i32
    %13 = arith.cmpi slt, %6, %c0_i32_3 : i32
    %14 = vector.broadcast %13 : i1 to vector<8x1xi1>
    %15 = vector.broadcast %14 : vector<8x1xi1> to vector<8x1xi1>
    %16 = arith.xori %12, %15 : vector<8x1xi1>
    %17 = arith.andi %16, %10 : vector<8x1xi1>
    %18 = vector.broadcast %6 : i32 to vector<8x1xi32>
    %19 = arith.addi %8, %18 : vector<8x1xi32>
    %20 = arith.select %17, %19, %8 : vector<8x1xi1>, vector<8x1xi32>
    %c1_i32_4 = arith.constant 1 : i32
    %21 = vector.broadcast %c1_i32_4 : i32 to vector<8x1xi32>
    %22 = arith.cmpi slt, %20, %21 : vector<8x1xi32>
    %cst = arith.constant 0.000000e+00 : f32
    %23 = vector.shape_cast %22 : vector<8x1xi1> to vector<8x1xi1>
    %24 = vector.broadcast %23 : vector<8x1xi1> to vector<8x128xi1>
    %25 = vector.broadcast %cst : f32 to vector<8x128xf32>
    %26 = arith.select %24, %25, %3 : vector<8x128xi1>, vector<8x128xf32>
    %c0_5 = arith.constant 0 : index
    %c0_6 = arith.constant 0 : index
    %27 = vector.load %arg3[%c0_5, %c0_6] : memref<128x128xf32, #tpu.memory_space<vmem>>, vector<128x128xf32>
    %cst_7 = arith.constant dense<0.000000e+00> : vector<8x128xf32>
    %28 = tpu.matmul %0, %27, %cst_7 {dimension_numbers = #tpu.dot_dimension_numbers<[1], [0], [0], [1], [0, 0, 1, 1], [], []>} : vector<8x128xf32>, vector<128x128xf32>, vector<8x128xf32> -> vector<8x128xf32>
    %c0_8 = arith.constant 0 : index
    %c0_9 = arith.constant 0 : index
    %29 = vector.load %arg2[%c0_8, %c0_9] : memref<128x128xf32, #tpu.memory_space<vmem>>, vector<128x128xf32>
    %cst_10 = arith.constant dense<0.000000e+00> : vector<8x128xf32>
    %30 = tpu.matmul %26, %29, %cst_10 {dimension_numbers = #tpu.dot_dimension_numbers<[1], [0], [0], [1], [0, 0, 1, 1], [], []>} : vector<8x128xf32>, vector<128x128xf32>, vector<8x128xf32> -> vector<8x128xf32>
    %31 = arith.addf %28, %30 : vector<8x128xf32>
    %c0_11 = arith.constant 0 : index
    %c0_12 = arith.constant 0 : index
    %32 = vector.load %arg4[%c0_11, %c0_12] : memref<1x128xf32, #tpu.memory_space<vmem>>, vector<1x128xf32>
    %33 = vector.broadcast %32 : vector<1x128xf32> to vector<8x128xf32>
    %34 = arith.addf %31, %33 : vector<8x128xf32>
    %cst_13 = arith.constant 0.000000e+00 : f32
    %35 = vector.broadcast %cst_13 : f32 to vector<8x128xf32>
    %36 = arith.maximumf %34, %35 : vector<8x128xf32>
    %c0_14 = arith.constant 0 : index
    %c0_15 = arith.constant 0 : index
    %37 = vector.load %arg5[%c0_14, %c0_15] : memref<8x128xf32, #tpu.memory_space<vmem>>, vector<8x128xf32>
    tpu.vector_store %arg5[%c0_14, %c0_15], %36 {strides = array<i32>} : memref<8x128xf32, #tpu.memory_space<vmem>>, vector<8x128xf32>,
    return
  }
  func.func @transform_0(%arg0: i32) -> (i32, i32) {
    %c0_i32 = arith.constant 0 : i32
    %c0_i32_0 = arith.constant 0 : i32
    return %arg0, %c0_i32 : i32, i32
  }
  func.func @transform_1(%arg0: i32) -> (i32, i32) {
    %c0_i32 = arith.constant 0 : i32
    %c0_i32_0 = arith.constant 0 : i32
    %c0_i32_1 = arith.constant 0 : i32
    return %c0_i32, %c0_i32_0 : i32, i32
  }
  func.func @transform_2(%arg0: i32) -> (i32, i32) {
    %c0_i32 = arith.constant 0 : i32
    %c0_i32_0 = arith.constant 0 : i32
    %c0_i32_1 = arith.constant 0 : i32
    return %c0_i32, %c0_i32_0 : i32, i32
  }
  func.func @transform_3(%arg0: i32) -> (i32, i32) {
    %c0_i32 = arith.constant 0 : i32
    %c0_i32_0 = arith.constant 0 : i32
    %c0_i32_1 = arith.constant 0 : i32
    return %c0_i32, %c0_i32_0 : i32, i32
  }
  func.func @transform_4(%arg0: i32) -> (i32, i32) {
    %c0_i32 = arith.constant 0 : i32
    %c0_i32_0 = arith.constant 0 : i32
    return %arg0, %c0_i32 : i32, i32
  }
}

</mosaic_0001>

<llo_original>
// kernel: tpu_custom_call.1
$region0: #{tpu_custom_call.1}
  #allocation0 [shape = 'u32[]', space=smem, size = 0x4, offset = 0x4, fixed_abs, tag = 'smem constant byte address 0x4 - core index']
  #allocation1 [shape = 'u32[144,128]{1,0:T(1,128)}', space=vmem, size = 0x12000, scoped, tag = 'internal scratch']
  %s0 = inlined_call_operand.hbm [shape: f32[16,128], index: 0, kind: input, shape index: {}]
  %s1 = inlined_call_operand.hbm [shape: f32[128,128], index: 1, kind: input, shape index: {}]
  %s2 = inlined_call_operand.hbm [shape: f32[128,128], index: 2, kind: input, shape index: {}]
  %s3 = inlined_call_operand.vmem [shape: f32[1,128], index: 3, kind: input, shape index: {}]
  %s4 = inlined_call_operand.hbm [shape: f32[16,128], index: 4, kind: output, shape index: {}]
  %s5 = sld [smem:[#allocation0]]
  $region61: #{tpu_custom_call.1} parent=0
    _
  %s7 = ssub.s32 1, %s5
  %s8 = scalar_select 0, %s7, %s5
  $region1: #{tpu_custom_call.1} parent=0
    #allocation2 [shape = 'u8[8192]{0}', space=vmem, size = 0x2000, scoped, tag = 'input window, operand 0']
    #allocation3 [shape = 's32[2]{0}', space=sflag, size = 0x8, scoped, tag = 'scoped memory for tpu_custom_call.1']
    #allocation4 [shape = 's32[2]{0}', space=sflag, size = 0x8, scoped, tag = 'scoped memory for tpu_custom_call.1']
    #allocation5 [shape = 'u8[65536]{0}', space=vmem, size = 0x10000, scoped, tag = 'input window, operand 1, single buffered']
    #allocation6 [shape = 's32[1]{0}', space=sflag, size = 0x4, scoped, tag = 'scoped memory for tpu_custom_call.1']
    #allocation7 [shape = 'u8[65536]{0}', space=vmem, size = 0x10000, scoped, tag = 'input window, operand 2, single buffered']
    #allocation8 [shape = 'u8[8192]{0}', space=vmem, size = 0x2000, scoped, tag = 'output window, operand 0']
    %9 = vsyncpa [#allocation3], 0
    %s10 = scalar_lea.sflag [#allocation3], 1
    %11 = vsyncpa %s10, 0
    %12 = vsyncpa [#allocation6], 0
    %13 = vsyncpa [#allocation4], 0
    %s14 = scalar_lea.sflag [#allocation4], 1
    %15 = vsyncpa %s14, 0
    loop: start=0, step=1, limit=4
    $region2: #{tpu_custom_call.1} parent=1 // loop_pre_header
      _
    $region3: #{tpu_custom_call.1} parent=1 // loop_header
      %s17 = sphi 0, %s21
      %p18 = scmp.ge.s32.totalorder %s17, 4
      %s27 = sphi 0, %s29
      %s30 = sphi 0, %s27
      %s31 = sphi 0, %s30
      %s47 = sphi 0, %s31
      %s51 = sphi 0, %s51
      %s53 = sphi 0, %s51
      %s54 = sphi 0, %s53
      %s68 = sphi 0, %s54
      %s72 = sphi 0, %s72
      %s74 = sphi 0, %s72
      %s75 = sphi 0, %s74
      %s89 = sphi 0, %s75
      %s93 = sphi 0, %s93
      %s95 = sphi 0, %s93
      %s96 = sphi 0, %s95
      %s110 = sphi 0, %s96
      %s116 = sphi 0, %s118
      %s119 = sphi 0, %s116
      %s120 = sphi 0, %s119
      %s136 = sphi 0, %s120
    $region4: #{tpu_custom_call.1} parent=1 // loop_header_branch
      %20 = sbr.rel (%p18) target = $region8
    $region5: #{tpu_custom_call.1} parent=1 // loop_body
      %s22 = ssub.s32 %s17, 1
      %s23 = ssub.s32 %s17, 2
      %s24 = sadd.s32 %s17, 1
      %s25 = ssub.s32 %s17, %s24
      %p26 = scmp.eq.s32.totalorder %s25, 0
      %s28 = sadd.s32 %s27, 1
      %s29 = scalar_select %p26, %s27, %s28
      %p32 = pneg %p26
      %p33 = scmp.eq.s32.totalorder %s17, 1
      %p34 = por %p32, %p33
      %p35 = scmp.ne.s32.totalorder %s27, %s30
      %p36 = scmp.eq.s32.totalorder %s17, 0
      %p37 = por %p35, %p36
      %p38 = scmp.ne.s32.totalorder %s27, %s30
      %p39 = scmp.eq.s32.totalorder %s22, 1
      %p40 = por %p38, %p39
      %p41 = scmp.ne.s32.totalorder %s30, %s31
      %p42 = scmp.eq.s32.totalorder %s22, 0
      %p43 = por %p41, %p42
      %p44 = scmp.ne.s32.totalorder %s30, %s31
      %p45 = scmp.eq.s32.totalorder %s23, 1
      %p46 = por %p44, %p45
      %p48 = scmp.ne.s32.totalorder %s31, %s47
      %p49 = scmp.eq.s32.totalorder %s23, 0
      %p50 = por %p48, %p49
      %s52 = sadd.s32 %s51, 1
      %p55 = scmp.eq.s32.totalorder %s17, 1
      %p56 = scmp.ne.s32.totalorder %s51, %s53
      %p57 = scmp.eq.s32.totalorder %s17, 0
      %p58 = por %p56, %p57
      %p59 = scmp.ne.s32.totalorder %s51, %s53
      %p60 = scmp.eq.s32.totalorder %s22, 1
      %p61 = por %p59, %p60
      %p62 = scmp.ne.s32.totalorder %s53, %s54
      %p63 = scmp.eq.s32.totalorder %s22, 0
      %p64 = por %p62, %p63
      %p65 = scmp.ne.s32.totalorder %s53, %s54
      %p66 = scmp.eq.s32.totalorder %s23, 1
      %p67 = por %p65, %p66
      %p69 = scmp.ne.s32.totalorder %s54, %s68
      %p70 = scmp.eq.s32.totalorder %s23, 0
      %p71 = por %p69, %p70
      %s73 = sadd.s32 %s72, 1
      %p76 = scmp.eq.s32.totalorder %s17, 1
      %p77 = scmp.ne.s32.totalorder %s72, %s74
      %p78 = scmp.eq.s32.totalorder %s17, 0
      %p79 = por %p77, %p78
      %p80 = scmp.ne.s32.totalorder %s72, %s74
      %p81 = scmp.eq.s32.totalorder %s22, 1
      %p82 = por %p80, %p81
      %p83 = scmp.ne.s32.totalorder %s74, %s75
      %p84 = scmp.eq.s32.totalorder %s22, 0
      %p85 = por %p83, %p84
      %p86 = scmp.ne.s32.totalorder %s74, %s75
      %p87 = scmp.eq.s32.totalorder %s23, 1
      %p88 = por %p86, %p87
      %p90 = scmp.ne.s32.totalorder %s75, %s89
      %p91 = scmp.eq.s32.totalorder %s23, 0
      %p92 = por %p90, %p91
      %s94 = sadd.s32 %s93, 1
      %p97 = scmp.eq.s32.totalorder %s17, 1
      %p98 = scmp.ne.s32.totalorder %s93, %s95
      %p99 = scmp.eq.s32.totalorder %s17, 0
      %p100 = por %p98, %p99
      %p101 = scmp.ne.s32.totalorder %s93, %s95
      %p102 = scmp.eq.s32.totalorder %s22, 1
      %p103 = por %p101, %p102
      %p104 = scmp.ne.s32.totalorder %s95, %s96
      %p105 = scmp.eq.s32.totalorder %s22, 0
      %p106 = por %p104, %p105
      %p107 = scmp.ne.s32.totalorder %s95, %s96
      %p108 = scmp.eq.s32.totalorder %s23, 1
      %p109 = por %p107, %p108
      %p111 = scmp.ne.s32.totalorder %s96, %s110
      %p112 = scmp.eq.s32.totalorder %s23, 0
      %p113 = por %p111, %p112
      %s114 = ssub.s32 %s17, %s24
      %p115 = scmp.eq.s32.totalorder %s114, 0
      %s117 = sadd.s32 %s116, 1
      %s118 = scalar_select %p115, %s116, %s117
      %p121 = pneg %p115
      %p122 = scmp.eq.s32.totalorder %s17, 1
      %p123 = por %p121, %p122
      %p124 = scmp.ne.s32.totalorder %s116, %s119
      %p125 = scmp.eq.s32.totalorder %s17, 0
      %p126 = por %p124, %p125
      %p127 = scmp.ne.s32.totalorder %s116, %s119
      %p128 = scmp.eq.s32.totalorder %s22, 1
      %p129 = por %p127, %p128
      %p130 = scmp.ne.s32.totalorder %s119, %s120
      %p131 = scmp.eq.s32.totalorder %s22, 0
      %p132 = por %p130, %p131
      %p133 = scmp.ne.s32.totalorder %s119, %s120
      %p134 = scmp.eq.s32.totalorder %s23, 1
      %p135 = por %p133, %p134
      %p137 = scmp.ne.s32.totalorder %s120, %s136
      %p138 = scmp.eq.s32.totalorder %s23, 0
      %p139 = por %p137, %p138
      %p140 = scmp.le.s32.totalorder 1, %s17
      %p141 = scmp.lt.s32.totalorder %s17, 3
      %p142 = pnand %p140, %p141
      %p143 = pneg %p142
      // Predicated region
      $region9: #{tpu_custom_call.1} parent=5 // pred_check
        _
      $region10: #{tpu_custom_call.1} parent=5 // pred_check_branch
        %145 = sbr.rel (%p142) target = $region12
      $region11: #{tpu_custom_call.1} parent=5 // pred_region
        %s146 = ssub.s32 %s17, 1
        // Predicated region
        $region13: #{tpu_custom_call.1} parent=11 // pred_check
          %p147 = pneg %p64
        $region14: #{tpu_custom_call.1} parent=11 // pred_check_branch
          %149 = sbr.rel (%p147) target = $region16
        $region15: #{tpu_custom_call.1} parent=11 // pred_region
          %s151 = ssub.s32 2048, 2048
          %152 = vsyncadd [#allocation6], %s151
          %s153 = sshll.u32 [#allocation5], 4
          %s154 = int_to_ptr.vmem [resolvable:$true] %s153
          %159 = dma.hbm_to_vmem [thread:$0]  %s1, 2048, %s154, [#allocation6], 128, 128, 8
        $region16: #{tpu_custom_call.1} parent=11 // pred_fallthru
          _
        // Predicated region
        $region17: #{tpu_custom_call.1} parent=11 // pred_check
          %p160 = pneg %p85
        $region18: #{tpu_custom_call.1} parent=11 // pred_check_branch
          %162 = sbr.rel (%p160) target = $region20
        $region19: #{tpu_custom_call.1} parent=11 // pred_region
          %s164 = ssub.s32 2048, 2048
          %165 = vsyncadd [#allocation6], %s164
          %s166 = sshll.u32 [#allocation7], 4
          %s167 = int_to_ptr.vmem [resolvable:$true] %s166
          %172 = dma.hbm_to_vmem [thread:$0]  %s2, 2048, %s167, [#allocation6], 128, 128, 8
        $region20: #{tpu_custom_call.1} parent=11 // pred_fallthru
          _
        // Predicated region
        $region21: #{tpu_custom_call.1} parent=11 // pred_check
          %p173 = pneg %p106
        $region22: #{tpu_custom_call.1} parent=11 // pred_check_branch
          %175 = sbr.rel (%p173) target = $region24
        $region23: #{tpu_custom_call.1} parent=11 // pred_region
          _
        $region24: #{tpu_custom_call.1} parent=11 // pred_fallthru
          _
      $region12: #{tpu_custom_call.1} parent=5 // pred_fallthru
        _
      %p176 = scmp.lt.s32.totalorder %s17, 2
      // Predicated region
      $region25: #{tpu_custom_call.1} parent=5 // pred_check
        %p177 = pneg %p176
      $region26: #{tpu_custom_call.1} parent=5 // pred_check_branch
        %179 = sbr.rel (%p177) target = $region28
      $region27: #{tpu_custom_call.1} parent=5 // pred_region
        // Predicated region
        $region29: #{tpu_custom_call.1} parent=27 // pred_check
          %p180 = pneg %p37
        $region30: #{tpu_custom_call.1} parent=27 // pred_check_branch
          %182 = sbr.rel (%p180) target = $region32
        $region31: #{tpu_custom_call.1} parent=27 // pred_region
          %s183 = sand.u32 %s27, 1
          %s184 = scalar_lea.sflag [#allocation3], %s183
          %s185 = sand.u32 %s27, 1
          %s186 = smul.addr %s185, 8
          %s187 = scalar_lea.vmem [#allocation2], %s186
          %s189 = ssub.s32 128, 128
          %190 = vsyncadd %s184, %s189
          %s191 = smul.addr %s17, 128
          %s192 = scalar_lea.hbm %s0, %s191
          %s194 = sshll.u32 %s187, 4
          %s195 = int_to_ptr.vmem [resolvable:$true] %s194
          %197 = dma.hbm_to_vmem [thread:$0]  %s192, 128, %s195, %s184
        $region32: #{tpu_custom_call.1} parent=27 // pred_fallthru
          _
      $region28: #{tpu_custom_call.1} parent=5 // pred_fallthru
        _
      %p198 = scmp.le.s32.totalorder 1, %s17
      %p199 = scmp.lt.s32.totalorder %s17, 3
      %p200 = pnand %p198, %p199
      %p201 = pneg %p200
      // Predicated region
      $region33: #{tpu_custom_call.1} parent=5 // pred_check
        _
      $region34: #{tpu_custom_call.1} parent=5 // pred_check_branch
        %203 = sbr.rel (%p200) target = $region36
      $region35: #{tpu_custom_call.1} parent=5 // pred_region
        %s204 = ssub.s32 %s17, 1
        %s205 = sand.u32 %s30, 1
        %s206 = scalar_lea.sflag [#allocation3], %s205
        %s207 = sand.u32 %s30, 1
        %s208 = smul.addr %s207, 8
        %s209 = scalar_lea.vmem [#allocation2], %s208
        // Predicated region
        $region37: #{tpu_custom_call.1} parent=35 // pred_check
          %p210 = pneg %p43
        $region38: #{tpu_custom_call.1} parent=35 // pred_check_branch
          %212 = sbr.rel (%p210) target = $region40
        $region39: #{tpu_custom_call.1} parent=35 // pred_region
          %213 = dma.done %s206, 128
        $region40: #{tpu_custom_call.1} parent=35 // pred_fallthru
          _
        // Predicated region
        $region41: #{tpu_custom_call.1} parent=35 // pred_check
          %p214 = pneg %p64
        $region42: #{tpu_custom_call.1} parent=35 // pred_check_branch
          %216 = sbr.rel (%p214) target = $region44
        $region43: #{tpu_custom_call.1} parent=35 // pred_region
          %217 = dma.done [#allocation6], 2048
        $region44: #{tpu_custom_call.1} parent=35 // pred_fallthru
          _
        // Predicated region
        $region45: #{tpu_custom_call.1} parent=35 // pred_check
          %p218 = pneg %p85
        $region46: #{tpu_custom_call.1} parent=35 // pred_check_branch
          %220 = sbr.rel (%p218) target = $region48
        $region47: #{tpu_custom_call.1} parent=35 // pred_region
          %221 = dma.done [#allocation6], 2048
        $region48: #{tpu_custom_call.1} parent=35 // pred_fallthru
          _
        %s222 = sand.u32 %s30, 1
        %s223 = scalar_lea.sflag [#allocation3], %s222
        %s224 = sand.u32 %s30, 1
        %s225 = smul.addr %s224, 8
        %s226 = scalar_lea.vmem [#allocation2], %s225
        %p227 = pneg %p43
        %p228 = pneg %p40
        %p229 = pneg %p64
        %p230 = pneg %p61
        %p231 = pneg %p85
        %p232 = pneg %p82
        %p233 = pneg %p106
        %p234 = pneg %p103
        %p235 = pneg %p132
        %p236 = pneg %p129
        %s237 = sand.u32 %s119, 1
        %s238 = scalar_lea.sflag [#allocation4], %s237
        %s239 = sand.u32 %s119, 1
        %s240 = smul.addr %s239, 8
        %s241 = scalar_lea.vmem [#allocation8], %s240
        %v242 = vld [vmem:[%s209] sm:$0xff]
        %v244 = vrot.slane %v242, 7
        %vm246 = vcmask 1040384
        %v247 = vsel %vm246, %v244, %v244
        %v248 = vlaneseq
        %v249 = vshrl.u32 %v248, 7
        %vm250 = vcmp.lt.s32.totalorder %v249, 0
        %v251 = vsub.s32 0, %v249
        %v252 = vsel %vm250, %v251, %v249
        %v253 = vshrl.u32 %v252, 3
        %v254 = vand.u32 %v252, 7
        %v255 = vsub.s32 0, %v254
        %v256 = vsel %vm250, %v255, %v254
        %vm257 = vcmp.ne.s32.totalorder %v256, 0
        %vm258 = vcmp.lt.s32.totalorder %v256, 0
        %vm259 = vmand %vm258, %vm257
        %v260 = vadd.s32 %v256, 8
        %v261 = vsel %vm259, %v260, %v256
        %vm262 = vcmp.lt.s32.totalorder %v261, 1
        %v263 = vsel %vm262, 1, 0
        %vm264 = vcmp.eq.s32.totalorder %v263, 1
        %v265 = vsel %vm264, 0.0, %v247
        %v266 = vld [vmem:[#allocation7] sm:$0xff]
        %v267 = vld [vmem:[#allocation7 + $0x8] sm:$0xff]
        %v268 = vld [vmem:[#allocation7 + $0x10] sm:$0xff]
        %v269 = vld [vmem:[#allocation7 + $0x18] sm:$0xff]
        %v270 = vld [vmem:[#allocation7 + $0x20] sm:$0xff]
        %v271 = vld [vmem:[#allocation7 + $0x28] sm:$0xff]
        %v272 = vld [vmem:[#allocation7 + $0x30] sm:$0xff]
        %v273 = vld [vmem:[#allocation7 + $0x38] sm:$0xff]
        %v274 = vld [vmem:[#allocation7 + $0x40] sm:$0xff]
        %v275 = vld [vmem:[#allocation7 + $0x48] sm:$0xff]
        %v276 = vld [vmem:[#allocation7 + $0x50] sm:$0xff]
        %v277 = vld [vmem:[#allocation7 + $0x58] sm:$0xff]
        %v278 = vld [vmem:[#allocation7 + $0x60] sm:$0xff]
        %v279 = vld [vmem:[#allocation7 + $0x68] sm:$0xff]
        %v280 = vld [vmem:[#allocation7 + $0x70] sm:$0xff]
        %v281 = vld [vmem:[#allocation7 + $0x78] sm:$0xff]
        %v282 = vld [vmem:[#allocation5] sm:$0xff]
        %v283 = vld [vmem:[#allocation5 + $0x8] sm:$0xff]
        %v284 = vld [vmem:[#allocation5 + $0x10] sm:$0xff]
        %v285 = vld [vmem:[#allocation5 + $0x18] sm:$0xff]
        %v286 = vld [vmem:[#allocation5 + $0x20] sm:$0xff]
        %v287 = vld [vmem:[#allocation5 + $0x28] sm:$0xff]
        %v288 = vld [vmem:[#allocation5 + $0x30] sm:$0xff]
        %v289 = vld [vmem:[#allocation5 + $0x38] sm:$0xff]
        %v290 = vld [vmem:[#allocation5 + $0x40] sm:$0xff]
        %v291 = vld [vmem:[#allocation5 + $0x48] sm:$0xff]
        %v292 = vld [vmem:[#allocation5 + $0x50] sm:$0xff]
        %v293 = vld [vmem:[#allocation5 + $0x58] sm:$0xff]
        %v294 = vld [vmem:[#allocation5 + $0x60] sm:$0xff]
        %v295 = vld [vmem:[#allocation5 + $0x68] sm:$0xff]
        %v296 = vld [vmem:[#allocation5 + $0x70] sm:$0xff]
        %v297 = vld [vmem:[#allocation5 + $0x78] sm:$0xff]
        %298 = vmatprep.subr.mxu0 0.0
        %299 = vmatpush1.msra.mxu0 %v297
        %300 = vmatprep.subr.mxu0 0.0
        %301 = vmatpush1.msra.mxu0 %v296
        %302 = vmatprep.subr.mxu0 0.0
        %303 = vmatpush1.msra.mxu0 %v295
        %304 = vmatprep.subr.mxu0 0.0
        %305 = vmatpush1.msra.mxu0 %v294
        %306 = vmatprep.subr.mxu0 0.0
        %307 = vmatpush1.msra.mxu0 %v293
        %308 = vmatprep.subr.mxu0 0.0
        %309 = vmatpush1.msra.mxu0 %v292
        %310 = vmatprep.subr.mxu0 0.0
        %311 = vmatpush1.msra.mxu0 %v291
        %312 = vmatprep.subr.mxu0 0.0
        %313 = vmatpush1.msra.mxu0 %v290
        %314 = vmatprep.subr.mxu0 0.0
        %315 = vmatpush1.msra.mxu0 %v289
        %316 = vmatprep.subr.mxu0 0.0
        %317 = vmatpush1.msra.mxu0 %v288
        %318 = vmatprep.subr.mxu0 0.0
        %319 = vmatpush1.msra.mxu0 %v287
        %320 = vmatprep.subr.mxu0 0.0
        %321 = vmatpush1.msra.mxu0 %v286
        %322 = vmatprep.subr.mxu0 0.0
        %323 = vmatpush1.msra.mxu0 %v285
        %324 = vmatprep.subr.mxu0 0.0
        %325 = vmatpush1.msra.mxu0 %v284
        %326 = vmatprep.subr.mxu0 0.0
        %327 = vmatpush1.msra.mxu0 %v283
        %328 = vmatprep.subr.mxu0 0.0
        %329 = vmatpush1.msra.mxu0 %v282
        %330 = vmatprep.subr.mxu0 0.0
        %331 = vmatpush2.msra.mxu0 0.0
        %332 = vmatprep.subr.mxu0 0.0
        %333 = vmatpush2.msra.mxu0 0.0
        %334 = vmatprep.subr.mxu0 0.0
        %335 = vmatpush2.msra.mxu0 0.0
        %336 = vmatprep.subr.mxu0 0.0
        %337 = vmatpush2.msra.mxu0 0.0
        %338 = vmatprep.subr.mxu0 0.0
        %339 = vmatpush2.msra.mxu0 0.0
        %340 = vmatprep.subr.mxu0 0.0
        %341 = vmatpush2.msra.mxu0 0.0
        %342 = vmatprep.subr.mxu0 0.0
        %343 = vmatpush2.msra.mxu0 0.0
        %344 = vmatprep.subr.mxu0 0.0
        %345 = vmatpush2.msra.mxu0 0.0
        %346 = vmatprep.subr.mxu0 0.0
        %347 = vmatpush2.msra.mxu0 0.0
        %348 = vmatprep.subr.mxu0 0.0
        %349 = vmatpush2.msra.mxu0 0.0
        %350 = vmatprep.subr.mxu0 0.0
        %351 = vmatpush2.msra.mxu0 0.0
        %352 = vmatprep.subr.mxu0 0.0
        %353 = vmatpush2.msra.mxu0 0.0
        %354 = vmatprep.subr.mxu0 0.0
        %355 = vmatpush2.msra.mxu0 0.0
        %356 = vmatprep.subr.mxu0 0.0
        %357 = vmatpush2.msra.mxu0 0.0
        %358 = vmatprep.subr.mxu0 0.0
        %359 = vmatpush2.msra.mxu0 0.0
        %360 = vmatprep.subr.mxu0 0.0
        %361 = vmatpush2.msra.mxu0 0.0
        %362 = vmatprep.mubr.f32.mxu0 0.0
        %363 = vmatmul.mubr.f32.gmra.mxu0 %v265
        %v364 = vpop.f32.mrf.mxu0
        %v365 = vadd.f32 0.0, %v364
        %v366 = vpop.f32.mrf.mxu0
        %367 = vdwg.mxu0
        %368 = vmatprep.subr.mxu0 0.0
        %369 = vmatpush1.msra.mxu0 %v281
        %370 = vmatprep.subr.mxu0 0.0
        %371 = vmatpush1.msra.mxu0 %v280
        %372 = vmatprep.subr.mxu0 0.0
        %373 = vmatpush1.msra.mxu0 %v279
        %374 = vmatprep.subr.mxu0 0.0
        %375 = vmatpush1.msra.mxu0 %v278
        %376 = vmatprep.subr.mxu0 0.0
        %377 = vmatpush1.msra.mxu0 %v277
        %378 = vmatprep.subr.mxu0 0.0
        %379 = vmatpush1.msra.mxu0 %v276
        %380 = vmatprep.subr.mxu0 0.0
        %381 = vmatpush1.msra.mxu0 %v275
        %382 = vmatprep.subr.mxu0 0.0
        %383 = vmatpush1.msra.mxu0 %v274
        %384 = vmatprep.subr.mxu0 0.0
        %385 = vmatpush1.msra.mxu0 %v273
        %386 = vmatprep.subr.mxu0 0.0
        %387 = vmatpush1.msra.mxu0 %v272
        %388 = vmatprep.subr.mxu0 0.0
        %389 = vmatpush1.msra.mxu0 %v271
        %390 = vmatprep.subr.mxu0 0.0
        %391 = vmatpush1.msra.mxu0 %v270
        %392 = vmatprep.subr.mxu0 0.0
        %393 = vmatpush1.msra.mxu0 %v269
        %394 = vmatprep.subr.mxu0 0.0
        %395 = vmatpush1.msra.mxu0 %v268
        %396 = vmatprep.subr.mxu0 0.0
        %397 = vmatpush1.msra.mxu0 %v267
        %398 = vmatprep.subr.mxu0 0.0
        %399 = vmatpush1.msra.mxu0 %v266
        %400 = vmatprep.subr.mxu0 0.0
        %401 = vmatpush2.msra.mxu0 0.0
        %402 = vmatprep.subr.mxu0 0.0
        %403 = vmatpush2.msra.mxu0 0.0
        %404 = vmatprep.subr.mxu0 0.0
        %405 = vmatpush2.msra.mxu0 0.0
        %406 = vmatprep.subr.mxu0 0.0
        %407 = vmatpush2.msra.mxu0 0.0
        %408 = vmatprep.subr.mxu0 0.0
        %409 = vmatpush2.msra.mxu0 0.0
        %410 = vmatprep.subr.mxu0 0.0
        %411 = vmatpush2.msra.mxu0 0.0
        %412 = vmatprep.subr.mxu0 0.0
        %413 = vmatpush2.msra.mxu0 0.0
        %414 = vmatprep.subr.mxu0 0.0
        %415 = vmatpush2.msra.mxu0 0.0
        %416 = vmatprep.subr.mxu0 0.0
        %417 = vmatpush2.msra.mxu0 0.0
        %418 = vmatprep.subr.mxu0 0.0
        %419 = vmatpush2.msra.mxu0 0.0
        %420 = vmatprep.subr.mxu0 0.0
        %421 = vmatpush2.msra.mxu0 0.0
        %422 = vmatprep.subr.mxu0 0.0
        %423 = vmatpush2.msra.mxu0 0.0
        %424 = vmatprep.subr.mxu0 0.0
        %425 = vmatpush2.msra.mxu0 0.0
        %426 = vmatprep.subr.mxu0 0.0
        %427 = vmatpush2.msra.mxu0 0.0
        %428 = vmatprep.subr.mxu0 0.0
        %429 = vmatpush2.msra.mxu0 0.0
        %430 = vmatprep.subr.mxu0 0.0
        %431 = vmatpush2.msra.mxu0 0.0
        %432 = vmatprep.mubr.f32.mxu0 0.0
        %433 = vmatmul.mubr.f32.gmra.mxu0 %v242
        %v434 = vpop.f32.mrf.mxu0
        %v435 = vadd.f32 %v365, %v434
        %v436 = vpop.f32.mrf.mxu0
        %437 = vdwg.mxu0
        %v438 = vld [vmem:[%s3] sm:$0x1]
        %v440 = vlaneseq
        %v441 = vshrl.u32 %v440, 7
        %v442 = vsub.s32 0, %v441
        %v443 = vrot.slane %v438, %v442
        %v445 = vadd.f32 %v435, %v443
        %v446 = vmax.f32 %v445, 0.0
        %447 = vst [vmem:[%s241] sm:$0xff] %v446
        %s448 = sand.u32 %s119, 1
        %s449 = scalar_lea.sflag [#allocation4], %s448
        %s450 = sand.u32 %s119, 1
        %s451 = smul.addr %s450, 8
        %s452 = scalar_lea.vmem [#allocation8], %s451
        // Predicated region
        $region49: #{tpu_custom_call.1} parent=35 // pred_check
          %p453 = pneg %p129
        $region50: #{tpu_custom_call.1} parent=35 // pred_check_branch
          %455 = sbr.rel (%p453) target = $region52
        $region51: #{tpu_custom_call.1} parent=35 // pred_region
          %s457 = ssub.s32 128, 128
          %458 = vsyncadd %s449, %s457
          %s459 = smul.addr %s22, 128
          %s460 = scalar_lea.hbm %s4, %s459
          %s462 = sshll.u32 %s452, 4
          %s463 = int_to_ptr.vmem [resolvable:$true] %s462
          %465 = dma.vmem_to_hbm [thread:$0]  %s463, 128, %s460, %s449
        $region52: #{tpu_custom_call.1} parent=35 // pred_fallthru
          _
      $region36: #{tpu_custom_call.1} parent=5 // pred_fallthru
        _
      %p466 = scmp.le.s32.totalorder 2, %s17
      // Predicated region
      $region53: #{tpu_custom_call.1} parent=5 // pred_check
        %p467 = pneg %p466
      $region54: #{tpu_custom_call.1} parent=5 // pred_check_branch
        %469 = sbr.rel (%p467) target = $region56
      $region55: #{tpu_custom_call.1} parent=5 // pred_region
        %s470 = ssub.s32 %s17, 2
        // Predicated region
        $region57: #{tpu_custom_call.1} parent=55 // pred_check
          %p471 = pneg %p135
        $region58: #{tpu_custom_call.1} parent=55 // pred_check_branch
          %473 = sbr.rel (%p471) target = $region60
        $region59: #{tpu_custom_call.1} parent=55 // pred_region
          %s474 = sand.u32 %s120, 1
          %s475 = scalar_lea.sflag [#allocation4], %s474
          %s476 = sand.u32 %s120, 1
          %s477 = smul.addr %s476, 8
          %s478 = scalar_lea.vmem [#allocation8], %s477
          %479 = dma.done %s475, 128
        $region60: #{tpu_custom_call.1} parent=55 // pred_fallthru
          _
      $region56: #{tpu_custom_call.1} parent=5 // pred_fallthru
        _
    $region6: #{tpu_custom_call.1} parent=1 // loop_footer
      %s21 = sadd.s32 1, %s17
    $region7: #{tpu_custom_call.1} parent=1 // loop_footer_branch
      %16 = sbr.rel target = $region3
    $region8: #{tpu_custom_call.1} parent=1 // loop_exit
      _
    %480 = vsyncpa [#allocation3], 1
    %s481 = scalar_lea.sflag [#allocation3], 1
    %482 = vsyncpa %s481, 1
    %483 = vsyncpa [#allocation6], 1
    %484 = vsyncpa [#allocation4], 1
    %s485 = scalar_lea.sflag [#allocation4], 1
    %486 = vsyncpa %s485, 1

</llo_original>
